<compile_context>
chip_gen: v7x
topology: tpu7x:2x2x1
jax: 0.10.0
libtpu: 0.0.40
codegen_flags: <defaults>
</compile_context>

<pallas_src>
import jax
import jax.numpy as jnp
from jax.experimental import pallas as pl
from jax.experimental.pallas import tpu as pltpu


def mlp_kernel(x_ref, w1_ref, b1_ref, w2_ref, b2_ref, o_ref):
    # fc1: [TB, D_in](bf16) @ [D_in, H](bf16) -> f32, + bias, ReLU
    h = jnp.dot(x_ref[...], w1_ref[...], preferred_element_type=jnp.float32)
    h = jnp.maximum(h + b1_ref[...], 0.0)
    # fc2: [TB, H](bf16) @ [H, C_pad](bf16) -> f32, + bias
    out = jnp.dot(h.astype(w2_ref.dtype), w2_ref[...],
                  preferred_element_type=jnp.float32)
    o_ref[...] = (out + b2_ref[...]).astype(o_ref.dtype)


def text_classifier_forward(x, w1, b1, w2, b2, *, tb=128):
    """Forward pass of TextClassifier.

    x:  [B, D_in] float32
    w1: [D_in, H] float32 (already transposed from PyTorch's [out, in])
    b1: [1, H]    float32
    w2: [H, C]    float32
    b2: [1, C]    float32
    Returns [B, C] float32 logits.
    """
    B, d_in = x.shape
    H = w1.shape[1]
    C = w2.shape[1]

    # Lane-dense output: pad class dim up to a multiple of 128.
    c_pad = ((C + 127) // 128) * 128
    # Batch padded up to a multiple of the batch tile.
    tb = min(tb, ((B + 7) // 8) * 8)          # keep tile a multiple of 8 sublanes
    b_pad = ((B + tb - 1) // tb) * tb

    # bf16 MXU operands, f32 biases.
    xb = x.astype(jnp.bfloat16)
    if b_pad != B:
        xb = jnp.pad(xb, ((0, b_pad - B), (0, 0)))
    w1b = w1.astype(jnp.bfloat16)
    w2b = jnp.pad(w2, ((0, 0), (0, c_pad - C))).astype(jnp.bfloat16)
    b1f = b1.astype(jnp.float32)
    b2f = jnp.pad(b2, ((0, 0), (0, c_pad - C))).astype(jnp.float32)

    out_padded = pl.pallas_call(
        mlp_kernel,
        out_shape=jax.ShapeDtypeStruct((b_pad, c_pad), jnp.float32),
        grid_spec=pl.GridSpec(
            grid=(b_pad // tb,),
            in_specs=[
                pl.BlockSpec((tb, d_in), lambda i: (i, 0)),     # x tile streams
                pl.BlockSpec((d_in, H), lambda i: (0, 0)),      # w1 resident
                pl.BlockSpec((1, H), lambda i: (0, 0)),         # b1 resident
                pl.BlockSpec((H, c_pad), lambda i: (0, 0)),     # w2 resident
                pl.BlockSpec((1, c_pad), lambda i: (0, 0)),     # b2 resident
            ],
            out_specs=pl.BlockSpec((tb, c_pad), lambda i: (i, 0)),
        ),
        compiler_params=pltpu.CompilerParams(
            # Batch axis is independent -> shard across TCs on v7x megacore.
            dimension_semantics=("parallel",),
        ),
    )(xb, w1b, b1f, w2b, b2f)

    # Strip batch padding and the lane-padding on the class axis.
    return out_padded[:B, :C]


if __name__ == "__main__":
    # Shapes implied by the module: Linear(input_size, hidden_size), Linear(hidden_size, 2)
    batch = 256          # large enough to exercise the batch-tiled grid (2 tiles of 128)
    input_size = 32
    hidden_size = 32
    num_classes = 2

    key = jax.random.PRNGKey(0)
    kx, kw1, kb1, kw2, kb2 = jax.random.split(key, 5)

    x = jax.random.normal(kx, (batch, input_size), dtype=jnp.float32)
    # PyTorch nn.Linear stores W as [out, in]; we generate directly in [in, out]
    # layout so the kernel computes x @ W + b.
    w1 = jax.random.normal(kw1, (input_size, hidden_size), dtype=jnp.float32) * 0.05
    b1 = jax.random.normal(kb1, (1, hidden_size), dtype=jnp.float32) * 0.05
    w2 = jax.random.normal(kw2, (hidden_size, num_classes), dtype=jnp.float32) * 0.05
    b2 = jax.random.normal(kb2, (1, num_classes), dtype=jnp.float32) * 0.05

    out = text_classifier_forward(x, w1, b1, w2, b2)
    out = jax.block_until_ready(out)

    # Pure-JAX reference using the same bf16-operand / f32-accumulate recipe.
    ref_h = jnp.maximum(
        jnp.dot(x.astype(jnp.bfloat16), w1.astype(jnp.bfloat16),
                preferred_element_type=jnp.float32) + b1, 0.0)
    ref = jnp.dot(ref_h.astype(jnp.bfloat16), w2.astype(jnp.bfloat16),
                  preferred_element_type=jnp.float32) + b2

    assert out.shape == (batch, num_classes)
    assert jnp.allclose(out, ref, atol=1e-2, rtol=1e-2), "mismatch vs reference"

    print("KERNEL_OK")
</pallas_src>

<mosaic_0001>
module attributes {stable_mosaic.version = 11 : i64} {
  func.func @mlp_kernel(%arg0: i32, %arg1: memref<128x32xbf16, #tpu.memory_space<vmem>>, %arg2: memref<32x32xbf16, #tpu.memory_space<vmem>>, %arg3: memref<1x32xf32, #tpu.memory_space<vmem>>, %arg4: memref<32x128xbf16, #tpu.memory_space<vmem>>, %arg5: memref<1x128xf32, #tpu.memory_space<vmem>>, %arg6: memref<128x128xf32, #tpu.memory_space<vmem>>) attributes {dimension_semantics = [#tpu.dimension_semantics<parallel>], iteration_bounds = array<i64: 2>, scalar_prefetch = 0 : i64, scratch_operands = 0 : i64, tpu.core_type = #tpu.core_type<tc>, window_params = [{transform_indices = @transform_0, window_bounds = array<i64: 128, 32>}, {pipeline_mode = #tpu.pipeline_mode<synchronous>, transform_indices = @transform_1, window_bounds = array<i64: 32, 32>}, {pipeline_mode = #tpu.pipeline_mode<synchronous>, transform_indices = @transform_2, window_bounds = array<i64: 1, 32>}, {pipeline_mode = #tpu.pipeline_mode<synchronous>, transform_indices = @transform_3, window_bounds = array<i64: 32, 128>}, {pipeline_mode = #tpu.pipeline_mode<synchronous>, transform_indices = @transform_4, window_bounds = array<i64: 1, 128>}, {transform_indices = @transform_5, window_bounds = array<i64: 128, 128>}]} {
    %c0 = arith.constant 0 : index
    %c0_0 = arith.constant 0 : index
    %0 = vector.load %arg1[%c0, %c0_0] : memref<128x32xbf16, #tpu.memory_space<vmem>>, vector<128x32xbf16>
    %c0_1 = arith.constant 0 : index
    %c0_2 = arith.constant 0 : index
    %1 = vector.load %arg2[%c0_1, %c0_2] : memref<32x32xbf16, #tpu.memory_space<vmem>>, vector<32x32xbf16>
    %cst = arith.constant dense<0.000000e+00> : vector<128x32xf32>
    %2 = tpu.matmul %0, %1, %cst {dimension_numbers = #tpu.dot_dimension_numbers<[1], [0], [0], [1], [0, 0, 1, 1], [], []>} : vector<128x32xbf16>, vector<32x32xbf16>, vector<128x32xf32> -> vector<128x32xf32>
    %c0_3 = arith.constant 0 : index
    %c0_4 = arith.constant 0 : index
    %3 = vector.load %arg3[%c0_3, %c0_4] : memref<1x32xf32, #tpu.memory_space<vmem>>, vector<1x32xf32>
    %4 = vector.broadcast %3 : vector<1x32xf32> to vector<128x32xf32>
    %5 = arith.addf %2, %4 : vector<128x32xf32>
    %cst_5 = arith.constant 0.000000e+00 : f32
    %6 = vector.broadcast %cst_5 : f32 to vector<128x32xf32>
    %7 = arith.maximumf %5, %6 : vector<128x32xf32>
    %8 = arith.truncf %7 : vector<128x32xf32> to vector<128x32xbf16>
    %c0_6 = arith.constant 0 : index
    %c0_7 = arith.constant 0 : index
    %9 = vector.load %arg4[%c0_6, %c0_7] : memref<32x128xbf16, #tpu.memory_space<vmem>>, vector<32x128xbf16>
    %cst_8 = arith.constant dense<0.000000e+00> : vector<128x128xf32>
    %10 = tpu.matmul %8, %9, %cst_8 {dimension_numbers = #tpu.dot_dimension_numbers<[1], [0], [0], [1], [0, 0, 1, 1], [], []>} : vector<128x32xbf16>, vector<32x128xbf16>, vector<128x128xf32> -> vector<128x128xf32>
    %c0_9 = arith.constant 0 : index
    %c0_10 = arith.constant 0 : index
    %11 = vector.load %arg5[%c0_9, %c0_10] : memref<1x128xf32, #tpu.memory_space<vmem>>, vector<1x128xf32>
    %12 = vector.broadcast %11 : vector<1x128xf32> to vector<128x128xf32>
    %13 = arith.addf %10, %12 : vector<128x128xf32>
    %c0_11 = arith.constant 0 : index
    %c0_12 = arith.constant 0 : index
    %14 = vector.load %arg6[%c0_11, %c0_12] : memref<128x128xf32, #tpu.memory_space<vmem>>, vector<128x128xf32>
    tpu.vector_store %arg6[%c0_11, %c0_12], %13 {strides = array<i32>} : memref<128x128xf32, #tpu.memory_space<vmem>>, vector<128x128xf32>,
    return
  }
  func.func @transform_0(%arg0: i32) -> (i32, i32) {
    %c0_i32 = arith.constant 0 : i32
    %c0_i32_0 = arith.constant 0 : i32
    return %arg0, %c0_i32 : i32, i32
  }
  func.func @transform_1(%arg0: i32) -> (i32, i32) {
    %c0_i32 = arith.constant 0 : i32
    %c0_i32_0 = arith.constant 0 : i32
    %c0_i32_1 = arith.constant 0 : i32
    return %c0_i32, %c0_i32_0 : i32, i32
  }
  func.func @transform_2(%arg0: i32) -> (i32, i32) {
    %c0_i32 = arith.constant 0 : i32
    %c0_i32_0 = arith.constant 0 : i32
    %c0_i32_1 = arith.constant 0 : i32
    return %c0_i32, %c0_i32_0 : i32, i32
  }
  func.func @transform_3(%arg0: i32) -> (i32, i32) {
    %c0_i32 = arith.constant 0 : i32
    %c0_i32_0 = arith.constant 0 : i32
    %c0_i32_1 = arith.constant 0 : i32
    return %c0_i32, %c0_i32_0 : i32, i32
  }
  func.func @transform_4(%arg0: i32) -> (i32, i32) {
    %c0_i32 = arith.constant 0 : i32
    %c0_i32_0 = arith.constant 0 : i32
    %c0_i32_1 = arith.constant 0 : i32
    return %c0_i32, %c0_i32_0 : i32, i32
  }
  func.func @transform_5(%arg0: i32) -> (i32, i32) {
    %c0_i32 = arith.constant 0 : i32
    %c0_i32_0 = arith.constant 0 : i32
    return %arg0, %c0_i32 : i32, i32
  }
}

</mosaic_0001>

<llo_original>
// kernel: tpu_custom_call.1
$region0: #{tpu_custom_call.1}
  #allocation0 [shape = 'u32[]', space=smem, size = 0x4, offset = 0x4, fixed_abs, tag = 'smem constant byte address 0x4 - core index']
  #allocation1 [shape = 'u32[144,128]{1,0:T(1,128)}', space=vmem, size = 0x12000, scoped, tag = 'internal scratch']
  %s0 = inlined_call_operand.vmem [shape: bf16[256,32], index: 0, kind: input, shape index: {}]
  %s1 = inlined_call_operand.vmem [shape: bf16[32,32], index: 1, kind: input, shape index: {}]
  %s2 = inlined_call_operand.vmem [shape: f32[1,32], index: 2, kind: input, shape index: {}]
  %s3 = inlined_call_operand.vmem [shape: bf16[32,128], index: 3, kind: input, shape index: {}]
  %s4 = inlined_call_operand.vmem [shape: f32[1,128], index: 4, kind: input, shape index: {}]
  %s5 = inlined_call_operand.hbm [shape: f32[256,128], index: 5, kind: output, shape index: {}]
  %s6 = sld [smem:[#allocation0]]
  $region53: #{tpu_custom_call.1} parent=0
    _
  %s8 = ssub.s32 1, %s6
  %s9 = scalar_select 0, %s8, %s6
  $region1: #{tpu_custom_call.1} parent=0
    #allocation2 [shape = 'u8[131072]{0}', space=vmem, size = 0x20000, scoped, tag = 'output window, operand 0']
    #allocation3 [shape = 's32[2]{0}', space=sflag, size = 0x8, scoped, tag = 'scoped memory for tpu_custom_call.1']
    %10 = vsyncpa [#allocation3], 0
    %s11 = scalar_lea.sflag [#allocation3], 1
    %12 = vsyncpa %s11, 0
    loop: start=0, step=1, limit=4
    $region2: #{tpu_custom_call.1} parent=1 // loop_pre_header
      _
    $region3: #{tpu_custom_call.1} parent=1 // loop_header
      %s14 = sphi 0, %s18
      %p15 = scmp.ge.s32.totalorder %s14, 4
      %s24 = sphi 0, %s26
      %s27 = sphi 0, %s24
      %s28 = sphi 0, %s27
      %s44 = sphi 0, %s28
      %s48 = sphi 0, %s48
      %s50 = sphi 0, %s48
      %s51 = sphi 0, %s50
      %s65 = sphi 0, %s51
      %s69 = sphi 0, %s69
      %s71 = sphi 0, %s69
      %s72 = sphi 0, %s71
      %s86 = sphi 0, %s72
      %s90 = sphi 0, %s90
      %s92 = sphi 0, %s90
      %s93 = sphi 0, %s92
      %s107 = sphi 0, %s93
      %s111 = sphi 0, %s111
      %s113 = sphi 0, %s111
      %s114 = sphi 0, %s113
      %s128 = sphi 0, %s114
      %s134 = sphi 0, %s136
      %s137 = sphi 0, %s134
      %s138 = sphi 0, %s137
      %s154 = sphi 0, %s138
    $region4: #{tpu_custom_call.1} parent=1 // loop_header_branch
      %17 = sbr.rel (%p15) target = $region8
    $region5: #{tpu_custom_call.1} parent=1 // loop_body
      %s19 = ssub.s32 %s14, 1
      %s20 = ssub.s32 %s14, 2
      %s21 = sadd.s32 %s14, 1
      %s22 = ssub.s32 %s14, %s21
      %p23 = scmp.eq.s32.totalorder %s22, 0
      %s25 = sadd.s32 %s24, 1
      %s26 = scalar_select %p23, %s24, %s25
      %p29 = pneg %p23
      %p30 = scmp.eq.s32.totalorder %s14, 1
      %p31 = por %p29, %p30
      %p32 = scmp.ne.s32.totalorder %s24, %s27
      %p33 = scmp.eq.s32.totalorder %s14, 0
      %p34 = por %p32, %p33
      %p35 = scmp.ne.s32.totalorder %s24, %s27
      %p36 = scmp.eq.s32.totalorder %s19, 1
      %p37 = por %p35, %p36
      %p38 = scmp.ne.s32.totalorder %s27, %s28
      %p39 = scmp.eq.s32.totalorder %s19, 0
      %p40 = por %p38, %p39
      %p41 = scmp.ne.s32.totalorder %s27, %s28
      %p42 = scmp.eq.s32.totalorder %s20, 1
      %p43 = por %p41, %p42
      %p45 = scmp.ne.s32.totalorder %s28, %s44
      %p46 = scmp.eq.s32.totalorder %s20, 0
      %p47 = por %p45, %p46
      %s49 = sadd.s32 %s48, 1
      %p52 = scmp.eq.s32.totalorder %s14, 1
      %p53 = scmp.ne.s32.totalorder %s48, %s50
      %p54 = scmp.eq.s32.totalorder %s14, 0
      %p55 = por %p53, %p54
      %p56 = scmp.ne.s32.totalorder %s48, %s50
      %p57 = scmp.eq.s32.totalorder %s19, 1
      %p58 = por %p56, %p57
      %p59 = scmp.ne.s32.totalorder %s50, %s51
      %p60 = scmp.eq.s32.totalorder %s19, 0
      %p61 = por %p59, %p60
      %p62 = scmp.ne.s32.totalorder %s50, %s51
      %p63 = scmp.eq.s32.totalorder %s20, 1
      %p64 = por %p62, %p63
      %p66 = scmp.ne.s32.totalorder %s51, %s65
      %p67 = scmp.eq.s32.totalorder %s20, 0
      %p68 = por %p66, %p67
      %s70 = sadd.s32 %s69, 1
      %p73 = scmp.eq.s32.totalorder %s14, 1
      %p74 = scmp.ne.s32.totalorder %s69, %s71
      %p75 = scmp.eq.s32.totalorder %s14, 0
      %p76 = por %p74, %p75
      %p77 = scmp.ne.s32.totalorder %s69, %s71
      %p78 = scmp.eq.s32.totalorder %s19, 1
      %p79 = por %p77, %p78
      %p80 = scmp.ne.s32.totalorder %s71, %s72
      %p81 = scmp.eq.s32.totalorder %s19, 0
      %p82 = por %p80, %p81
      %p83 = scmp.ne.s32.totalorder %s71, %s72
      %p84 = scmp.eq.s32.totalorder %s20, 1
      %p85 = por %p83, %p84
      %p87 = scmp.ne.s32.totalorder %s72, %s86
      %p88 = scmp.eq.s32.totalorder %s20, 0
      %p89 = por %p87, %p88
      %s91 = sadd.s32 %s90, 1
      %p94 = scmp.eq.s32.totalorder %s14, 1
      %p95 = scmp.ne.s32.totalorder %s90, %s92
      %p96 = scmp.eq.s32.totalorder %s14, 0
      %p97 = por %p95, %p96
      %p98 = scmp.ne.s32.totalorder %s90, %s92
      %p99 = scmp.eq.s32.totalorder %s19, 1
      %p100 = por %p98, %p99
      %p101 = scmp.ne.s32.totalorder %s92, %s93
      %p102 = scmp.eq.s32.totalorder %s19, 0
      %p103 = por %p101, %p102
      %p104 = scmp.ne.s32.totalorder %s92, %s93
      %p105 = scmp.eq.s32.totalorder %s20, 1
      %p106 = por %p104, %p105
      %p108 = scmp.ne.s32.totalorder %s93, %s107
      %p109 = scmp.eq.s32.totalorder %s20, 0
      %p110 = por %p108, %p109
      %s112 = sadd.s32 %s111, 1
      %p115 = scmp.eq.s32.totalorder %s14, 1
      %p116 = scmp.ne.s32.totalorder %s111, %s113
      %p117 = scmp.eq.s32.totalorder %s14, 0
      %p118 = por %p116, %p117
      %p119 = scmp.ne.s32.totalorder %s111, %s113
      %p120 = scmp.eq.s32.totalorder %s19, 1
      %p121 = por %p119, %p120
      %p122 = scmp.ne.s32.totalorder %s113, %s114
      %p123 = scmp.eq.s32.totalorder %s19, 0
      %p124 = por %p122, %p123
      %p125 = scmp.ne.s32.totalorder %s113, %s114
      %p126 = scmp.eq.s32.totalorder %s20, 1
      %p127 = por %p125, %p126
      %p129 = scmp.ne.s32.totalorder %s114, %s128
      %p130 = scmp.eq.s32.totalorder %s20, 0
      %p131 = por %p129, %p130
      %s132 = ssub.s32 %s14, %s21
      %p133 = scmp.eq.s32.totalorder %s132, 0
      %s135 = sadd.s32 %s134, 1
      %s136 = scalar_select %p133, %s134, %s135
      %p139 = pneg %p133
      %p140 = scmp.eq.s32.totalorder %s14, 1
      %p141 = por %p139, %p140
      %p142 = scmp.ne.s32.totalorder %s134, %s137
      %p143 = scmp.eq.s32.totalorder %s14, 0
      %p144 = por %p142, %p143
      %p145 = scmp.ne.s32.totalorder %s134, %s137
      %p146 = scmp.eq.s32.totalorder %s19, 1
      %p147 = por %p145, %p146
      %p148 = scmp.ne.s32.totalorder %s137, %s138
      %p149 = scmp.eq.s32.totalorder %s19, 0
      %p150 = por %p148, %p149
      %p151 = scmp.ne.s32.totalorder %s137, %s138
      %p152 = scmp.eq.s32.totalorder %s20, 1
      %p153 = por %p151, %p152
      %p155 = scmp.ne.s32.totalorder %s138, %s154
      %p156 = scmp.eq.s32.totalorder %s20, 0
      %p157 = por %p155, %p156
      %p158 = scmp.le.s32.totalorder 1, %s14
      %p159 = scmp.lt.s32.totalorder %s14, 3
      %p160 = pnand %p158, %p159
      %p161 = pneg %p160
      // Predicated region
      $region9: #{tpu_custom_call.1} parent=5 // pred_check
        _
      $region10: #{tpu_custom_call.1} parent=5 // pred_check_branch
        %163 = sbr.rel (%p160) target = $region12
      $region11: #{tpu_custom_call.1} parent=5 // pred_region
        %s164 = ssub.s32 %s14, 1
        // Predicated region
        $region13: #{tpu_custom_call.1} parent=11 // pred_check
          %p165 = pneg %p61
        $region14: #{tpu_custom_call.1} parent=11 // pred_check_branch
          %167 = sbr.rel (%p165) target = $region16
        $region15: #{tpu_custom_call.1} parent=11 // pred_region
          _
        $region16: #{tpu_custom_call.1} parent=11 // pred_fallthru
          _
        // Predicated region
        $region17: #{tpu_custom_call.1} parent=11 // pred_check
          %p168 = pneg %p82
        $region18: #{tpu_custom_call.1} parent=11 // pred_check_branch
          %170 = sbr.rel (%p168) target = $region20
        $region19: #{tpu_custom_call.1} parent=11 // pred_region
          _
        $region20: #{tpu_custom_call.1} parent=11 // pred_fallthru
          _
        // Predicated region
        $region21: #{tpu_custom_call.1} parent=11 // pred_check
          %p171 = pneg %p103
        $region22: #{tpu_custom_call.1} parent=11 // pred_check_branch
          %173 = sbr.rel (%p171) target = $region24
        $region23: #{tpu_custom_call.1} parent=11 // pred_region
          _
        $region24: #{tpu_custom_call.1} parent=11 // pred_fallthru
          _
        // Predicated region
        $region25: #{tpu_custom_call.1} parent=11 // pred_check
          %p174 = pneg %p124
        $region26: #{tpu_custom_call.1} parent=11 // pred_check_branch
          %176 = sbr.rel (%p174) target = $region28
        $region27: #{tpu_custom_call.1} parent=11 // pred_region
          _
        $region28: #{tpu_custom_call.1} parent=11 // pred_fallthru
          _
      $region12: #{tpu_custom_call.1} parent=5 // pred_fallthru
        _
      %p177 = scmp.lt.s32.totalorder %s14, 2
      // Predicated region
      $region29: #{tpu_custom_call.1} parent=5 // pred_check
        %p178 = pneg %p177
      $region30: #{tpu_custom_call.1} parent=5 // pred_check_branch
        %180 = sbr.rel (%p178) target = $region32
      $region31: #{tpu_custom_call.1} parent=5 // pred_region
        // Predicated region
        $region33: #{tpu_custom_call.1} parent=31 // pred_check
          %p181 = pneg %p34
        $region34: #{tpu_custom_call.1} parent=31 // pred_check_branch
          %183 = sbr.rel (%p181) target = $region36
        $region35: #{tpu_custom_call.1} parent=31 // pred_region
          %s184 = smul.u32 16, %s14
          %p185 = scmp.lt.s32.totalorder %s184, 31
          %s186 = scalar_select %p185, %s184, 31
          %s187 = smul.addr %s186, 4
          %s188 = scalar_lea.vmem %s0, %s187
          %s189 = smul.u32 16, %s14
        $region36: #{tpu_custom_call.1} parent=31 // pred_fallthru
          _
      $region32: #{tpu_custom_call.1} parent=5 // pred_fallthru
        _
      %p190 = scmp.le.s32.totalorder 1, %s14
      %p191 = scmp.lt.s32.totalorder %s14, 3
      %p192 = pnand %p190, %p191
      %p193 = pneg %p192
      // Predicated region
      $region37: #{tpu_custom_call.1} parent=5 // pred_check
        _
      $region38: #{tpu_custom_call.1} parent=5 // pred_check_branch
        %195 = sbr.rel (%p192) target = $region40
      $region39: #{tpu_custom_call.1} parent=5 // pred_region
        %s196 = ssub.s32 %s14, 1
        %s197 = smul.u32 16, %s19
        %p198 = scmp.lt.s32.totalorder %s197, 31
        %s199 = scalar_select %p198, %s197, 31
        %s200 = smul.addr %s199, 4
        %s201 = scalar_lea.vmem %s0, %s200
        %p202 = pneg %p40
        %p203 = pneg %p37
        %p204 = pneg %p61
        %p205 = pneg %p58
        %p206 = pneg %p82
        %p207 = pneg %p79
        %p208 = pneg %p103
        %p209 = pneg %p100
        %p210 = pneg %p124
        %p211 = pneg %p121
        %p212 = pneg %p150
        %p213 = pneg %p147
        %s214 = sand.u32 %s137, 1
        %s215 = scalar_lea.sflag [#allocation3], %s214
        %s216 = sand.u32 %s137, 1
        %s217 = smul.addr %s216, 128
        %s218 = scalar_lea.vmem [#allocation2], %s217
        %s219 = smul.u32 16, %s19
        %p220 = scmp.lt.s32.totalorder %s219, 31
        %s221 = scalar_select %p220, %s219, 31
        %s222 = smul.addr %s221, 4
        %s223 = scalar_lea.vmem %s0, %s222
        %s224 = smul.u32 16, %s19
        %s225 = smul.u32 16, %s19
        %v227 = vld [vmem:[%s223] sm:$0xf]
        %v228 = vld [vmem:[%s223 + $0x4] sm:$0xf]
        %v229 = vld [vmem:[%s223 + $0x8] sm:$0xf]
        %v230 = vld [vmem:[%s223 + $0xc] sm:$0xf]
        %v231 = vld [vmem:[%s223 + $0x10] sm:$0xf]
        %v232 = vld [vmem:[%s223 + $0x14] sm:$0xf]
        %v233 = vld [vmem:[%s223 + $0x18] sm:$0xf]
        %v234 = vld [vmem:[%s223 + $0x1c] sm:$0xf]
        %v235 = vld [vmem:[%s223 + $0x20] sm:$0xf]
        %v236 = vld [vmem:[%s223 + $0x24] sm:$0xf]
        %v237 = vld [vmem:[%s223 + $0x28] sm:$0xf]
        %v238 = vld [vmem:[%s223 + $0x2c] sm:$0xf]
        %v239 = vld [vmem:[%s223 + $0x30] sm:$0xf]
        %v240 = vld [vmem:[%s223 + $0x34] sm:$0xf]
        %v241 = vld [vmem:[%s223 + $0x38] sm:$0xf]
        %v242 = vld [vmem:[%s223 + $0x3c] sm:$0xf]
        %v243 = vld [vmem:[%s1] sm:$0xf]
        %v244 = vld [vmem:[%s1 + $0x4] sm:$0xf]
        %v245 = vld [vmem:[%s1 + $0x8] sm:$0xf]
        %v246 = vld [vmem:[%s1 + $0xc] sm:$0xf]
        %v247 = vld [vmem:[%s2] sm:$0x1]
        %v249 = vlaneseq
        %v250 = vshrl.u32 %v249, 7
        %v251 = vsub.s32 0, %v250
        %v252 = vrot.slane %v247, %v251
        %v270 = vunpack.c.l.b16 %v227
        %v271 = vunpack.c.l.b16 %v228
        %v272 = vunpack.c.l.b16 %v229
        %v273 = vunpack.c.l.b16 %v230
        %v274 = vunpack.c.l.b16 %v231
        %v275 = vunpack.c.l.b16 %v232
        %v276 = vunpack.c.l.b16 %v233
        %v277 = vunpack.c.l.b16 %v234
        %v278 = vunpack.c.l.b16 %v235
        %v279 = vunpack.c.l.b16 %v236
        %v280 = vunpack.c.l.b16 %v237
        %v281 = vunpack.c.l.b16 %v238
        %v282 = vunpack.c.l.b16 %v239
        %v283 = vunpack.c.l.b16 %v240
        %v284 = vunpack.c.l.b16 %v241
        %v285 = vunpack.c.l.b16 %v242
        %v286 = vpack.c.b16 %v271, %v270
        %v287 = vpack.c.b16 %v273, %v272
        %v288 = vpack.c.b16 %v275, %v274
        %v289 = vpack.c.b16 %v277, %v276
        %v290 = vpack.c.b16 %v279, %v278
        %v291 = vpack.c.b16 %v281, %v280
        %v292 = vpack.c.b16 %v283, %v282
        %v293 = vpack.c.b16 %v285, %v284
        %v298 = vunpack.c.l.b16 %v243
        %v299 = vunpack.c.l.b16 %v244
        %v300 = vunpack.c.l.b16 %v245
        %v301 = vunpack.c.l.b16 %v246
        %v302 = vpack.c.b16 %v299, %v298
        %v303 = vpack.c.b16 %v301, %v300
        %vm306 = vcmask 261120
        %v308 = vsel %vm306, %v286, 0
        %v311 = vsel %vm306, %v287, 0
        %v314 = vsel %vm306, %v288, 0
        %v317 = vsel %vm306, %v289, 0
        %v320 = vsel %vm306, %v290, 0
        %v323 = vsel %vm306, %v291, 0
        %v326 = vsel %vm306, %v292, 0
        %v329 = vsel %vm306, %v293, 0
        %331 = vmatprep.subr.bf16.mxu0 0
        %332 = vmatpush1.bf16.msra.mxu0 %v302
        %333 = vmatprep.subr.bf16.mxu0 0
        %334 = vmatpush1.bf16.msra.mxu0 %v303
        %335 = vmatprep.subr.bf16.mxu0 0
        %336 = vmatpush1.bf16.msra.mxu0 0
        %337 = vmatprep.subr.bf16.mxu0 0
        %338 = vmatpush1.bf16.msra.mxu0 0
        %339 = vmatprep.subr.bf16.mxu0 0
        %340 = vmatpush1.bf16.msra.mxu0 0
        %341 = vmatprep.subr.bf16.mxu0 0
        %342 = vmatpush1.bf16.msra.mxu0 0
        %343 = vmatprep.subr.bf16.mxu0 0
        %344 = vmatpush1.bf16.msra.mxu0 0
        %345 = vmatprep.subr.bf16.mxu0 0
        %346 = vmatpush1.bf16.msra.mxu0 0
        %347 = vmatprep.subr.bf16.mxu0 0
        %348 = vmatpush1.bf16.msra.mxu0 0
        %349 = vmatprep.subr.bf16.mxu0 0
        %350 = vmatpush1.bf16.msra.mxu0 0
        %351 = vmatprep.subr.bf16.mxu0 0
        %352 = vmatpush1.bf16.msra.mxu0 0
        %353 = vmatprep.subr.bf16.mxu0 0
        %354 = vmatpush1.bf16.msra.mxu0 0
        %355 = vmatprep.subr.bf16.mxu0 0
        %356 = vmatpush1.bf16.msra.mxu0 0
        %357 = vmatprep.subr.bf16.mxu0 0
        %358 = vmatpush1.bf16.msra.mxu0 0
        %359 = vmatprep.subr.bf16.mxu0 0
        %360 = vmatpush1.bf16.msra.mxu0 0
        %361 = vmatprep.subr.bf16.mxu0 0
        %362 = vmatpush1.bf16.msra.mxu0 0
        %363 = vmatprep.mubr.bf16.mxu0 0
        %364 = vmatmul.mubr.bf16.gmra.mrb[0].mxu0 %v308
        %v365 = vpop.f32.mrb[0].mxu0
        %v366 = vadd.f32 %v252, %v365
        %v367 = vpop.f32.mrb[0].mxu0
        %v368 = vpop.f32.mrb[0].mxu0
        %v369 = vadd.f32 %v252, %v368
        %v370 = vpop.f32.mrb[0].mxu0
        %371 = vmatprep.mubr.bf16.mxu0 0
        %372 = vmatmul.mubr.bf16.gmra.mrb[0].mxu0 %v311
        %v373 = vpop.f32.mrb[0].mxu0
        %v374 = vadd.f32 %v252, %v373
        %v375 = vpop.f32.mrb[0].mxu0
        %v376 = vpop.f32.mrb[0].mxu0
        %v377 = vadd.f32 %v252, %v376
        %v378 = vpop.f32.mrb[0].mxu0
        %379 = vmatprep.mubr.bf16.mxu0 0
        %380 = vmatmul.mubr.bf16.gmra.mrb[0].mxu0 %v314
        %v381 = vpop.f32.mrb[0].mxu0
        %v382 = vadd.f32 %v252, %v381
        %v383 = vpop.f32.mrb[0].mxu0
        %v384 = vpop.f32.mrb[0].mxu0
        %v385 = vadd.f32 %v252, %v384
        %v386 = vpop.f32.mrb[0].mxu0
        %387 = vmatprep.mubr.bf16.mxu0 0
        %388 = vmatmul.mubr.bf16.gmra.mrb[0].mxu0 %v317
        %v389 = vpop.f32.mrb[0].mxu0
        %v390 = vadd.f32 %v252, %v389
        %v391 = vpop.f32.mrb[0].mxu0
        %v392 = vpop.f32.mrb[0].mxu0
        %v393 = vadd.f32 %v252, %v392
        %v394 = vpop.f32.mrb[0].mxu0
        %395 = vmatprep.mubr.bf16.mxu0 0
        %396 = vmatmul.mubr.bf16.gmra.mrb[0].mxu0 %v320
        %v397 = vpop.f32.mrb[0].mxu0
        %v398 = vadd.f32 %v252, %v397
        %v399 = vpop.f32.mrb[0].mxu0
        %v400 = vpop.f32.mrb[0].mxu0
        %v401 = vadd.f32 %v252, %v400
        %v402 = vpop.f32.mrb[0].mxu0
        %403 = vmatprep.mubr.bf16.mxu0 0
        %404 = vmatmul.mubr.bf16.gmra.mrb[0].mxu0 %v323
        %v405 = vpop.f32.mrb[0].mxu0
        %v406 = vadd.f32 %v252, %v405
        %v407 = vpop.f32.mrb[0].mxu0
        %v408 = vpop.f32.mrb[0].mxu0
        %v409 = vadd.f32 %v252, %v408
        %v410 = vpop.f32.mrb[0].mxu0
        %411 = vmatprep.mubr.bf16.mxu0 0
        %412 = vmatmul.mubr.bf16.gmra.mrb[0].mxu0 %v326
        %v413 = vpop.f32.mrb[0].mxu0
        %v414 = vadd.f32 %v252, %v413
        %v415 = vpop.f32.mrb[0].mxu0
        %v416 = vpop.f32.mrb[0].mxu0
        %v417 = vadd.f32 %v252, %v416
        %v418 = vpop.f32.mrb[0].mxu0
        %419 = vmatprep.mubr.bf16.mxu0 0
        %420 = vmatmul.mubr.bf16.gmra.mrb[0].mxu0 %v329
        %v421 = vpop.f32.mrb[0].mxu0
        %v422 = vadd.f32 %v252, %v421
        %v423 = vpop.f32.mrb[0].mxu0
        %v424 = vpop.f32.mrb[0].mxu0
        %v425 = vadd.f32 %v252, %v424
        %v426 = vpop.f32.mrb[0].mxu0
        %427 = vdwg.mxu0
        %v428 = vmax.f32 %v366, 0.0
        %v429 = vmax.f32 %v369, 0.0
        %v430 = vmax.f32 %v374, 0.0
        %v431 = vmax.f32 %v377, 0.0
        %v432 = vmax.f32 %v382, 0.0
        %v433 = vmax.f32 %v385, 0.0
        %v434 = vmax.f32 %v390, 0.0
        %v435 = vmax.f32 %v393, 0.0
        %v436 = vmax.f32 %v398, 0.0
        %v437 = vmax.f32 %v401, 0.0
        %v438 = vmax.f32 %v406, 0.0
        %v439 = vmax.f32 %v409, 0.0
        %v440 = vmax.f32 %v414, 0.0
        %v441 = vmax.f32 %v417, 0.0
        %v442 = vmax.f32 %v422, 0.0
        %v443 = vmax.f32 %v425, 0.0
        %v444 = vpack.c.bf16 %v429, %v428
        %v445 = vpack.c.bf16 %v431, %v430
        %v446 = vpack.c.bf16 %v433, %v432
        %v447 = vpack.c.bf16 %v435, %v434
        %v448 = vpack.c.bf16 %v437, %v436
        %v449 = vpack.c.bf16 %v439, %v438
        %v450 = vpack.c.bf16 %v441, %v440
        %v451 = vpack.c.bf16 %v443, %v442
        %v452 = vld [vmem:[%s3] sm:$0xf]
        %v453 = vld [vmem:[%s3 + $0x4] sm:$0xf]
        %v454 = vld [vmem:[%s3 + $0x8] sm:$0xf]
        %v455 = vld [vmem:[%s3 + $0xc] sm:$0xf]
        %v456 = vld [vmem:[%s4] sm:$0x1]
        %v458 = vlaneseq
        %v459 = vshrl.u32 %v458, 7
        %v460 = vsub.s32 0, %v459
        %v461 = vrot.slane %v456, %v460
        %v467 = vunpack.c.l.b16 %v452
        %v468 = vunpack.c.l.b16 %v453
        %v469 = vunpack.c.l.b16 %v454
        %v470 = vunpack.c.l.b16 %v455
        %v471 = vpack.c.b16 %v468, %v467
        %v472 = vpack.c.b16 %v470, %v469
        %v476 = vsel %vm306, %v444, 0
        %v479 = vsel %vm306, %v445, 0
        %v482 = vsel %vm306, %v446, 0
        %v485 = vsel %vm306, %v447, 0
        %v488 = vsel %vm306, %v448, 0
        %v491 = vsel %vm306, %v449, 0
        %v494 = vsel %vm306, %v450, 0
        %v497 = vsel %vm306, %v451, 0
        %499 = vmatprep.subr.bf16.mxu0 0
        %500 = vmatpush1.bf16.msra.mxu0 %v471
        %501 = vmatprep.subr.bf16.mxu0 0
        %502 = vmatpush1.bf16.msra.mxu0 %v472
        %503 = vmatprep.subr.bf16.mxu0 0
        %504 = vmatpush1.bf16.msra.mxu0 0
        %505 = vmatprep.subr.bf16.mxu0 0
        %506 = vmatpush1.bf16.msra.mxu0 0
        %507 = vmatprep.subr.bf16.mxu0 0
        %508 = vmatpush1.bf16.msra.mxu0 0
        %509 = vmatprep.subr.bf16.mxu0 0
        %510 = vmatpush1.bf16.msra.mxu0 0
        %511 = vmatprep.subr.bf16.mxu0 0
        %512 = vmatpush1.bf16.msra.mxu0 0
        %513 = vmatprep.subr.bf16.mxu0 0
        %514 = vmatpush1.bf16.msra.mxu0 0
        %515 = vmatprep.subr.bf16.mxu0 0
        %516 = vmatpush1.bf16.msra.mxu0 0
        %517 = vmatprep.subr.bf16.mxu0 0
        %518 = vmatpush1.bf16.msra.mxu0 0
        %519 = vmatprep.subr.bf16.mxu0 0
        %520 = vmatpush1.bf16.msra.mxu0 0
        %521 = vmatprep.subr.bf16.mxu0 0
        %522 = vmatpush1.bf16.msra.mxu0 0
        %523 = vmatprep.subr.bf16.mxu0 0
        %524 = vmatpush1.bf16.msra.mxu0 0
        %525 = vmatprep.subr.bf16.mxu0 0
        %526 = vmatpush1.bf16.msra.mxu0 0
        %527 = vmatprep.subr.bf16.mxu0 0
        %528 = vmatpush1.bf16.msra.mxu0 0
        %529 = vmatprep.subr.bf16.mxu0 0
        %530 = vmatpush1.bf16.msra.mxu0 0
        %531 = vmatprep.mubr.bf16.mxu0 0
        %532 = vmatmul.mubr.bf16.gmra.mrb[0].mxu0 %v476
        %v533 = vpop.f32.mrb[0].mxu0
        %v534 = vadd.f32 %v461, %v533
        %v535 = vpop.f32.mrb[0].mxu0
        %v536 = vpop.f32.mrb[0].mxu0
        %v537 = vadd.f32 %v461, %v536
        %v538 = vpop.f32.mrb[0].mxu0
        %539 = vmatprep.mubr.bf16.mxu0 0
        %540 = vmatmul.mubr.bf16.gmra.mrb[0].mxu0 %v479
        %v541 = vpop.f32.mrb[0].mxu0
        %v542 = vadd.f32 %v461, %v541
        %v543 = vpop.f32.mrb[0].mxu0
        %v544 = vpop.f32.mrb[0].mxu0
        %v545 = vadd.f32 %v461, %v544
        %v546 = vpop.f32.mrb[0].mxu0
        %547 = vmatprep.mubr.bf16.mxu0 0
        %548 = vmatmul.mubr.bf16.gmra.mrb[0].mxu0 %v482
        %v549 = vpop.f32.mrb[0].mxu0
        %v550 = vadd.f32 %v461, %v549
        %v551 = vpop.f32.mrb[0].mxu0
        %v552 = vpop.f32.mrb[0].mxu0
        %v553 = vadd.f32 %v461, %v552
        %v554 = vpop.f32.mrb[0].mxu0
        %555 = vmatprep.mubr.bf16.mxu0 0
        %556 = vmatmul.mubr.bf16.gmra.mrb[0].mxu0 %v485
        %v557 = vpop.f32.mrb[0].mxu0
        %v558 = vadd.f32 %v461, %v557
        %v559 = vpop.f32.mrb[0].mxu0
        %v560 = vpop.f32.mrb[0].mxu0
        %v561 = vadd.f32 %v461, %v560
        %v562 = vpop.f32.mrb[0].mxu0
        %563 = vmatprep.mubr.bf16.mxu0 0
        %564 = vmatmul.mubr.bf16.gmra.mrb[0].mxu0 %v488
        %v565 = vpop.f32.mrb[0].mxu0
        %v566 = vadd.f32 %v461, %v565
        %v567 = vpop.f32.mrb[0].mxu0
        %v568 = vpop.f32.mrb[0].mxu0
        %v569 = vadd.f32 %v461, %v568
        %v570 = vpop.f32.mrb[0].mxu0
        %571 = vmatprep.mubr.bf16.mxu0 0
        %572 = vmatmul.mubr.bf16.gmra.mrb[0].mxu0 %v491
        %v573 = vpop.f32.mrb[0].mxu0
        %v574 = vadd.f32 %v461, %v573
        %v575 = vpop.f32.mrb[0].mxu0
        %v576 = vpop.f32.mrb[0].mxu0
        %v577 = vadd.f32 %v461, %v576
        %v578 = vpop.f32.mrb[0].mxu0
        %579 = vmatprep.mubr.bf16.mxu0 0
        %580 = vmatmul.mubr.bf16.gmra.mrb[0].mxu0 %v494
        %v581 = vpop.f32.mrb[0].mxu0
        %v582 = vadd.f32 %v461, %v581
        %v583 = vpop.f32.mrb[0].mxu0
        %v584 = vpop.f32.mrb[0].mxu0
        %v585 = vadd.f32 %v461, %v584
        %v586 = vpop.f32.mrb[0].mxu0
        %587 = vmatprep.mubr.bf16.mxu0 0
        %588 = vmatmul.mubr.bf16.gmra.mrb[0].mxu0 %v497
        %v589 = vpop.f32.mrb[0].mxu0
        %v590 = vadd.f32 %v461, %v589
        %v591 = vpop.f32.mrb[0].mxu0
        %v592 = vpop.f32.mrb[0].mxu0
        %v593 = vadd.f32 %v461, %v592
        %v594 = vpop.f32.mrb[0].mxu0
        %595 = vdwg.mxu0
        %596 = vst [vmem:[%s218] sm:$0xff] %v534
        %597 = vst [vmem:[%s218 + $0x8] sm:$0xff] %v537
        %598 = vst [vmem:[%s218 + $0x10] sm:$0xff] %v542
        %599 = vst [vmem:[%s218 + $0x18] sm:$0xff] %v545
        %600 = vst [vmem:[%s218 + $0x20] sm:$0xff] %v550
        %601 = vst [vmem:[%s218 + $0x28] sm:$0xff] %v553
        %602 = vst [vmem:[%s218 + $0x30] sm:$0xff] %v558
        %603 = vst [vmem:[%s218 + $0x38] sm:$0xff] %v561
        %604 = vst [vmem:[%s218 + $0x40] sm:$0xff] %v566
        %605 = vst [vmem:[%s218 + $0x48] sm:$0xff] %v569
        %606 = vst [vmem:[%s218 + $0x50] sm:$0xff] %v574
        %607 = vst [vmem:[%s218 + $0x58] sm:$0xff] %v577
        %608 = vst [vmem:[%s218 + $0x60] sm:$0xff] %v582
        %609 = vst [vmem:[%s218 + $0x68] sm:$0xff] %v585
        %610 = vst [vmem:[%s218 + $0x70] sm:$0xff] %v590
        %611 = vst [vmem:[%s218 + $0x78] sm:$0xff] %v593
        %s612 = sand.u32 %s137, 1
        %s613 = scalar_lea.sflag [#allocation3], %s612
        %s614 = sand.u32 %s137, 1
        %s615 = smul.addr %s614, 128
        %s616 = scalar_lea.vmem [#allocation2], %s615
        // Predicated region
        $region41: #{tpu_custom_call.1} parent=39 // pred_check
          %p617 = pneg %p147
        $region42: #{tpu_custom_call.1} parent=39 // pred_check_branch
          %619 = sbr.rel (%p617) target = $region44
        $region43: #{tpu_custom_call.1} parent=39 // pred_region
          %s620 = smul.u32 16, %s19
          %s622 = ssub.s32 2048, 2048
          %623 = vsyncadd %s613, %s622
          %s624 = smul.addr %s620, 128
          %s625 = scalar_lea.hbm %s5, %s624
          %s626 = sshll.u32 %s616, 4
          %s627 = int_to_ptr.vmem [resolvable:$true] %s626
          %632 = dma.vmem_to_hbm [thread:$0]  %s627, 2048, %s625, %s613, 128, 128, 8
        $region44: #{tpu_custom_call.1} parent=39 // pred_fallthru
          _
      $region40: #{tpu_custom_call.1} parent=5 // pred_fallthru
        _
      %p633 = scmp.le.s32.totalorder 2, %s14
      // Predicated region
      $region45: #{tpu_custom_call.1} parent=5 // pred_check
        %p634 = pneg %p633
      $region46: #{tpu_custom_call.1} parent=5 // pred_check_branch
        %636 = sbr.rel (%p634) target = $region48
      $region47: #{tpu_custom_call.1} parent=5 // pred_region
        %s637 = ssub.s32 %s14, 2
        // Predicated region
        $region49: #{tpu_custom_call.1} parent=47 // pred_check
          %p638 = pneg %p153
        $region50: #{tpu_custom_call.1} parent=47 // pred_check_branch
          %640 = sbr.rel (%p638) target = $region52
        $region51: #{tpu_custom_call.1} parent=47 // pred_region
          %s641 = sand.u32 %s138, 1
          %s642 = scalar_lea.sflag [#allocation3], %s641
          %s643 = sand.u32 %s138, 1
          %s644 = smul.addr %s643, 128
          %s645 = scalar_lea.vmem [#allocation2], %s644
          %646 = dma.done %s642, 2048
        $region52: #{tpu_custom_call.1} parent=47 // pred_fallthru
          _
      $region48: #{tpu_custom_call.1} parent=5 // pred_fallthru
        _
    $region6: #{tpu_custom_call.1} parent=1 // loop_footer
      %s18 = sadd.s32 1, %s14
    $region7: #{tpu_custom_call.1} parent=1 // loop_footer_branch
      %13 = sbr.rel target = $region3
    $region8: #{tpu_custom_call.1} parent=1 // loop_exit
      _
    %647 = vsyncpa [#allocation3], 1
    %s648 = scalar_lea.sflag [#allocation3], 1
    %649 = vsyncpa %s648, 1

</llo_original>
